<compile_context>
chip_gen: v5e
topology: v5e:2x2
jax: 0.10.0
libtpu: 0.0.40
codegen_flags: <defaults>
</compile_context>

<pallas_src>
import functools
import math

import jax
import jax.numpy as jnp
from jax.experimental import pallas as pl
from jax.experimental.pallas import tpu as pltpu


def _apply_act(x, name):
    if name is None:
        return x
    if name == "gelu":
        # TODO(synk): PyTorch nn.GELU() defaults to exact erf GELU; the tanh
        # approximation is used here for a guaranteed TPU lowering.
        return jax.nn.gelu(x, approximate=True)
    return x * jax.nn.sigmoid(x)  # SiLU


def _te_kernel(x_ref, w1_ref, b1_ref, w2_ref, b2_ref, o_ref, *, act, post_act):
    # x: [tb, Cin] bf16, w1: [Cin, Dh] bf16, w2: [Dh, Dout] bf16, biases f32.
    x = x_ref[...]
    h = jnp.dot(x, w1_ref[...], preferred_element_type=jnp.float32) + b1_ref[...]
    h = _apply_act(h, act)
    y = jnp.dot(h.astype(w2_ref.dtype), w2_ref[...],
                preferred_element_type=jnp.float32) + b2_ref[...]
    y = _apply_act(y, post_act)
    o_ref[...] = y.astype(o_ref.dtype)


def _te_cond_kernel(x_ref, c_ref, wc_ref, w1_ref, b1_ref, w2_ref, b2_ref, o_ref,
                    *, act, post_act):
    # sample = sample + cond_proj(timestep_cond)  (cond_proj has no bias)
    xc = x_ref[...].astype(jnp.float32) + jnp.dot(
        c_ref[...], wc_ref[...], preferred_element_type=jnp.float32)
    h = jnp.dot(xc.astype(w1_ref.dtype), w1_ref[...],
                preferred_element_type=jnp.float32) + b1_ref[...]
    h = _apply_act(h, act)
    y = jnp.dot(h.astype(w2_ref.dtype), w2_ref[...],
                preferred_element_type=jnp.float32) + b2_ref[...]
    y = _apply_act(y, post_act)
    o_ref[...] = y.astype(o_ref.dtype)


def _round_up(n, m):
    return ((n + m - 1) // m) * m


def timestep_embedding_forward(sample, params, *, act_fn="silu",
                               post_act_fn=None, timestep_cond=None,
                               tile_b=256):
    """sample: [B, in_channels] f32 -> [B, time_embed_dim_out] f32 (PyTorch semantics)."""
    B, cin = sample.shape
    w1, b1, w2, b2 = params["w1"], params["b1"], params["w2"], params["b2"]
    dh, dout = w1.shape[1], w2.shape[1]
    has_cond = timestep_cond is not None

    # Batch tiling: pad rows to an 8-sublane multiple, tile up to `tile_b` rows.
    tb = min(tile_b, _round_up(B, 8))
    b_pad = _round_up(B, tb)
    grid = (b_pad // tb,)

    x = sample.astype(jnp.bfloat16)
    if b_pad != B:
        x = jnp.pad(x, ((0, b_pad - B), (0, 0)))

    def row_spec(shape):
        return pl.BlockSpec(shape, lambda i: (i, 0))

    def rep_spec(shape):          # constant block index -> DMA'd once, stays resident
        return pl.BlockSpec(shape, lambda i: (0, 0))

    in_arrays = [x]
    in_specs = [row_spec((tb, cin))]
    flops = 2 * b_pad * cin * dh + 2 * b_pad * dh * dout
    bytes_accessed = ((cin * dh + dh * dout) * 2 + (dh + dout) * 4
                      + b_pad * cin * 2 + b_pad * dout * 4)
    extra_vmem = 0

    if has_cond:
        wc = params["wc"]
        ccond = wc.shape[0]
        c = timestep_cond.astype(jnp.bfloat16)
        if b_pad != B:
            c = jnp.pad(c, ((0, b_pad - B), (0, 0)))
        in_arrays += [c, wc]
        in_specs += [row_spec((tb, ccond)), rep_spec((ccond, cin))]
        flops += 2 * b_pad * ccond * cin
        bytes_accessed += ccond * cin * 2 + b_pad * ccond * 2
        extra_vmem = 2 * (tb * ccond * 2 + ccond * cin * 2)
        kernel = functools.partial(_te_cond_kernel, act=act_fn, post_act=post_act_fn)
    else:
        kernel = functools.partial(_te_kernel, act=act_fn, post_act=post_act_fn)

    in_arrays += [w1, b1, w2, b2]
    in_specs += [rep_spec((cin, dh)), rep_spec((1, dh)),
                 rep_spec((dh, dout)), rep_spec((1, dout))]

    # Scoped-VMEM budget: the default pipeline double-buffers every operand
    # even when its block index is constant. Only raise the limit when needed
    # (v5e default scoped limit 16 MiB; v7x physical VMEM 64 MiB).
    need = (2 * 2 * tb * (cin + dout) * 4                         # x/out double buffers
            + 2 * ((cin * dh + dh * dout) * 2 + (dh + dout) * 4)  # resident weights/biases
            + 3 * tb * max(cin, dh, dout) * 4                     # in-kernel intermediates
            + extra_vmem)
    vmem_limit = None
    if need > 12 * 2**20:
        vmem_limit = int(min(64 * 2**20, need * 2))

    out = pl.pallas_call(
        kernel,
        out_shape=jax.ShapeDtypeStruct((b_pad, dout), sample.dtype),
        grid=grid,
        in_specs=in_specs,
        out_specs=pl.BlockSpec((tb, dout), lambda i: (i, 0)),
        compiler_params=pltpu.CompilerParams(
            dimension_semantics=("parallel",),
            vmem_limit_bytes=vmem_limit),
        cost_estimate=pl.CostEstimate(
            flops=int(flops),
            transcendentals=int(b_pad * (dh + (dout if post_act_fn else 0))),
            bytes_accessed=int(bytes_accessed)),
    )(*in_arrays)
    return out[:B]


def init_linear_params(key, fan_in, fan_out, *, bias=True, w_dtype=jnp.bfloat16):
    """nn.Linear-style init (uniform +/- 1/sqrt(fan_in)); weight stored [in, out]."""
    kw, kb = jax.random.split(key)
    bound = 1.0 / math.sqrt(fan_in)
    w = jax.random.uniform(kw, (fan_in, fan_out), jnp.float32, -bound, bound)
    w = w.astype(w_dtype)
    if not bias:
        return w, None
    b = jax.random.uniform(kb, (1, fan_out), jnp.float32, -bound, bound)
    return w, b


if __name__ == "__main__":
    in_channels = 32
    time_embed_dim = 128   # lane-dense hidden (multiple of 128)
    out_dim = 256          # lane-dense output (multiple of 128), != time_embed_dim
    cond_dim = 16
    batch = 2

    key = jax.random.PRNGKey(0)
    k1, k2, k3, k4, k5, k6 = jax.random.split(key, 6)

    # Path 1/2 params: linear_2 keeps time_embed_dim output (out_dim=None case).
    w1, b1 = init_linear_params(k1, in_channels, time_embed_dim)
    w2, b2 = init_linear_params(k2, time_embed_dim, time_embed_dim)
    wc, _ = init_linear_params(k3, cond_dim, in_channels, bias=False)
    params = {"w1": w1, "b1": b1, "w2": w2, "b2": b2, "wc": wc}

    # Path 3 params: explicit out_dim for linear_2.
    w2o, b2o = init_linear_params(k6, time_embed_dim, out_dim)
    params_o = {"w1": w1, "b1": b1, "w2": w2o, "b2": b2o}

    sample = jax.random.normal(k4, (batch, in_channels), jnp.float32)
    cond = jax.random.normal(k5, (batch, cond_dim), jnp.float32)

    # Pure-JAX reference mirroring the kernel's bf16-weight / f32-accumulate math.
    def act_ref(x, name):
        if name is None:
            return x
        if name == "gelu":
            return jax.nn.gelu(x, approximate=True)
        return x * jax.nn.sigmoid(x)

    def ref_forward(x, wa, ba, wb, bb, c=None, act="silu", post_act=None):
        xr = x.astype(jnp.bfloat16).astype(jnp.float32)
        if c is not None:
            cr = c.astype(jnp.bfloat16).astype(jnp.float32)
            xr = xr + cr @ wc.astype(jnp.float32)
        h = xr.astype(jnp.bfloat16).astype(jnp.float32) @ wa.astype(jnp.float32) + ba
        h = act_ref(h, act)
        h = h.astype(jnp.bfloat16).astype(jnp.float32)
        y = h @ wb.astype(jnp.float32) + bb
        return act_ref(y, post_act)

    # Path 1: default TimestepEmbedding (no cond_proj, SiLU act, no post-act).
    out = timestep_embedding_forward(sample, params, act_fn="silu")
    out = jax.block_until_ready(out)
    assert out.shape == (batch, time_embed_dim), out.shape
    assert jnp.allclose(out, ref_forward(sample, w1, b1, w2, b2),
                        atol=5e-3, rtol=5e-3)

    # Path 2: fused cond_proj branch (timestep_cond is not None).
    out_c = timestep_embedding_forward(sample, params, act_fn="silu",
                                       timestep_cond=cond)
    out_c = jax.block_until_ready(out_c)
    assert out_c.shape == (batch, time_embed_dim), out_c.shape
    assert jnp.allclose(out_c, ref_forward(sample, w1, b1, w2, b2, c=cond),
                        atol=5e-3, rtol=5e-3)

    # Path 3: GELU act + post_act + out_dim != time_embed_dim.
    out_g = timestep_embedding_forward(sample, params_o, act_fn="gelu",
                                       post_act_fn="silu")
    out_g = jax.block_until_ready(out_g)
    assert out_g.shape == (batch, out_dim), out_g.shape
    assert jnp.allclose(out_g,
                        ref_forward(sample, w1, b1, w2o, b2o,
                                    act="gelu", post_act="silu"),
                        atol=5e-3, rtol=5e-3)

    print("KERNEL_OK")
</pallas_src>

<mosaic_0001>
module attributes {stable_mosaic.version = 11 : i64} {
  func.func @_te_kernel(%arg0: i32, %arg1: memref<8x32xbf16, #tpu.memory_space<vmem>>, %arg2: memref<32x128xbf16, #tpu.memory_space<vmem>>, %arg3: memref<1x128xf32, #tpu.memory_space<vmem>>, %arg4: memref<128x128xbf16, #tpu.memory_space<vmem>>, %arg5: memref<1x128xf32, #tpu.memory_space<vmem>>, %arg6: memref<8x128xf32, #tpu.memory_space<vmem>>) attributes {dimension_semantics = [#tpu.dimension_semantics<parallel>], iteration_bounds = array<i64: 1>, scalar_prefetch = 0 : i64, scratch_operands = 0 : i64, tpu.core_type = #tpu.core_type<tc>, window_params = [{transform_indices = @transform_0, window_bounds = array<i64: 8, 32>}, {pipeline_mode = #tpu.pipeline_mode<synchronous>, transform_indices = @transform_1, window_bounds = array<i64: 32, 128>}, {pipeline_mode = #tpu.pipeline_mode<synchronous>, transform_indices = @transform_2, window_bounds = array<i64: 1, 128>}, {pipeline_mode = #tpu.pipeline_mode<synchronous>, transform_indices = @transform_3, window_bounds = array<i64: 128, 128>}, {pipeline_mode = #tpu.pipeline_mode<synchronous>, transform_indices = @transform_4, window_bounds = array<i64: 1, 128>}, {transform_indices = @transform_5, window_bounds = array<i64: 8, 128>}]} {
    %c0 = arith.constant 0 : index
    %c0_0 = arith.constant 0 : index
    %0 = vector.load %arg1[%c0, %c0_0] : memref<8x32xbf16, #tpu.memory_space<vmem>>, vector<8x32xbf16>
    %c0_1 = arith.constant 0 : index
    %c0_2 = arith.constant 0 : index
    %1 = vector.load %arg2[%c0_1, %c0_2] : memref<32x128xbf16, #tpu.memory_space<vmem>>, vector<32x128xbf16>
    %cst = arith.constant dense<0.000000e+00> : vector<8x128xf32>
    %2 = tpu.matmul %0, %1, %cst {dimension_numbers = #tpu.dot_dimension_numbers<[1], [0], [0], [1], [0, 0, 1, 1], [], []>} : vector<8x32xbf16>, vector<32x128xbf16>, vector<8x128xf32> -> vector<8x128xf32>
    %c0_3 = arith.constant 0 : index
    %c0_4 = arith.constant 0 : index
    %3 = vector.load %arg3[%c0_3, %c0_4] : memref<1x128xf32, #tpu.memory_space<vmem>>, vector<1x128xf32>
    %4 = vector.broadcast %3 : vector<1x128xf32> to vector<8x128xf32>
    %5 = arith.addf %2, %4 : vector<8x128xf32>
    %6 = arith.negf %5 : vector<8x128xf32>
    %7 = math.exp %6 : vector<8x128xf32>
    %cst_5 = arith.constant 1.000000e+00 : f32
    %8 = vector.broadcast %cst_5 : f32 to vector<8x128xf32>
    %9 = arith.addf %8, %7 : vector<8x128xf32>
    %10 = arith.divf %8, %9 : vector<8x128xf32>
    %11 = arith.mulf %5, %10 : vector<8x128xf32>
    %12 = arith.truncf %11 : vector<8x128xf32> to vector<8x128xbf16>
    %c0_6 = arith.constant 0 : index
    %c0_7 = arith.constant 0 : index
    %13 = vector.load %arg4[%c0_6, %c0_7] : memref<128x128xbf16, #tpu.memory_space<vmem>>, vector<128x128xbf16>
    %cst_8 = arith.constant dense<0.000000e+00> : vector<8x128xf32>
    %14 = tpu.matmul %12, %13, %cst_8 {dimension_numbers = #tpu.dot_dimension_numbers<[1], [0], [0], [1], [0, 0, 1, 1], [], []>} : vector<8x128xbf16>, vector<128x128xbf16>, vector<8x128xf32> -> vector<8x128xf32>
    %c0_9 = arith.constant 0 : index
    %c0_10 = arith.constant 0 : index
    %15 = vector.load %arg5[%c0_9, %c0_10] : memref<1x128xf32, #tpu.memory_space<vmem>>, vector<1x128xf32>
    %16 = vector.broadcast %15 : vector<1x128xf32> to vector<8x128xf32>
    %17 = arith.addf %14, %16 : vector<8x128xf32>
    %c0_11 = arith.constant 0 : index
    %c0_12 = arith.constant 0 : index
    %18 = vector.load %arg6[%c0_11, %c0_12] : memref<8x128xf32, #tpu.memory_space<vmem>>, vector<8x128xf32>
    tpu.vector_store %arg6[%c0_11, %c0_12], %17 {strides = array<i32>} : memref<8x128xf32, #tpu.memory_space<vmem>>, vector<8x128xf32>,
    return
  }
  func.func @transform_0(%arg0: i32) -> (i32, i32) {
    %c0_i32 = arith.constant 0 : i32
    %c0_i32_0 = arith.constant 0 : i32
    return %arg0, %c0_i32 : i32, i32
  }
  func.func @transform_1(%arg0: i32) -> (i32, i32) {
    %c0_i32 = arith.constant 0 : i32
    %c0_i32_0 = arith.constant 0 : i32
    %c0_i32_1 = arith.constant 0 : i32
    return %c0_i32, %c0_i32_0 : i32, i32
  }
  func.func @transform_2(%arg0: i32) -> (i32, i32) {
    %c0_i32 = arith.constant 0 : i32
    %c0_i32_0 = arith.constant 0 : i32
    %c0_i32_1 = arith.constant 0 : i32
    return %c0_i32, %c0_i32_0 : i32, i32
  }
  func.func @transform_3(%arg0: i32) -> (i32, i32) {
    %c0_i32 = arith.constant 0 : i32
    %c0_i32_0 = arith.constant 0 : i32
    %c0_i32_1 = arith.constant 0 : i32
    return %c0_i32, %c0_i32_0 : i32, i32
  }
  func.func @transform_4(%arg0: i32) -> (i32, i32) {
    %c0_i32 = arith.constant 0 : i32
    %c0_i32_0 = arith.constant 0 : i32
    %c0_i32_1 = arith.constant 0 : i32
    return %c0_i32, %c0_i32_0 : i32, i32
  }
  func.func @transform_5(%arg0: i32) -> (i32, i32) {
    %c0_i32 = arith.constant 0 : i32
    %c0_i32_0 = arith.constant 0 : i32
    return %arg0, %c0_i32 : i32, i32
  }
}

</mosaic_0001>

<llo_original>
// kernel: tpu_custom_call.1
$region0: #{tpu_custom_call.1}
  #allocation0 [shape = 'u32[]', space=smem, size = 0x4, offset = 0x4, fixed_abs, tag = 'smem constant byte address 0x4 - core index']
  #allocation1 [shape = 'u32[72,128]{1,0:T(1,128)}', space=vmem, size = 0x9000, scoped, tag = 'internal scratch']
  %s0 = inlined_call_operand.hbm [shape: bf16[8,32], index: 0, kind: input, shape index: {}]
  %s1 = inlined_call_operand.hbm [shape: bf16[32,128], index: 1, kind: input, shape index: {}]
  %s2 = inlined_call_operand.vmem [shape: f32[1,128], index: 2, kind: input, shape index: {}]
  %s3 = inlined_call_operand.hbm [shape: bf16[128,128], index: 3, kind: input, shape index: {}]
  %s4 = inlined_call_operand.vmem [shape: f32[1,128], index: 4, kind: input, shape index: {}]
  %s5 = inlined_call_operand.hbm [shape: f32[8,128], index: 5, kind: output, shape index: {}]
  %s6 = sld [smem:[#allocation0]]
  $region42: #{tpu_custom_call.1} parent=0
    _
  %s8 = ssub.s32 1, %s6
  %s9 = scalar_select 0, %s8, %s6
  $region1: #{tpu_custom_call.1} parent=0
    #allocation2 [shape = 'u8[2048]{0}', space=vmem, size = 0x800, scoped, tag = 'input window, operand 0, single buffered']
    #allocation3 [shape = 's32[1]{0}', space=sflag, size = 0x4, scoped, tag = 'scoped memory for tpu_custom_call.1']
    #allocation4 [shape = 's32[1]{0}', space=sflag, size = 0x4, scoped, tag = 'scoped memory for tpu_custom_call.1']
    #allocation5 [shape = 'u8[8192]{0}', space=vmem, size = 0x2000, scoped, tag = 'input window, operand 1, single buffered']
    #allocation6 [shape = 's32[1]{0}', space=sflag, size = 0x4, scoped, tag = 'scoped memory for tpu_custom_call.1']
    #allocation7 [shape = 'u8[32768]{0}', space=vmem, size = 0x8000, scoped, tag = 'input window, operand 3, single buffered']
    #allocation8 [shape = 'u8[4096]{0}', space=vmem, size = 0x1000, scoped, tag = 'output window, operand 0, single buffered']
    %10 = vsyncpa [#allocation3], 0
    %11 = vsyncpa [#allocation6], 0
    %12 = vsyncpa [#allocation4], 0
    // Predicated region
    $region2: #{tpu_custom_call.1} parent=1 // pred_check
      _
    $region3: #{tpu_custom_call.1} parent=1 // pred_check_branch
      %14 = sbr.rel (0) target = $region5
    $region4: #{tpu_custom_call.1} parent=1 // pred_region
      %16 = vsyncadd [#allocation3], 0
      %s18 = sshll.u32 %s0, 4
      %s19 = int_to_ptr.hbm [resolvable:$true] %s18
      %s20 = sshll.u32 [#allocation2], 4
      %s21 = int_to_ptr.vmem [resolvable:$true] %s20
      %23 = dma.hbm_to_vmem [thread:$0]  %s19, 64, %s21, [#allocation3]
    $region5: #{tpu_custom_call.1} parent=1 // pred_fallthru
      _
    // Predicated region
    $region6: #{tpu_custom_call.1} parent=1 // pred_check
      _
    $region7: #{tpu_custom_call.1} parent=1 // pred_check_branch
      %25 = sbr.rel (0) target = $region9
    $region8: #{tpu_custom_call.1} parent=1 // pred_region
      %27 = vsyncadd [#allocation6], 0
      %s28 = sshll.u32 %s1, 4
      %s29 = int_to_ptr.hbm [resolvable:$true] %s28
      %s30 = sshll.u32 [#allocation5], 4
      %s31 = int_to_ptr.vmem [resolvable:$true] %s30
      %36 = dma.hbm_to_vmem [thread:$0]  %s29, 256, %s31, [#allocation6], 64, 64, 4
    $region9: #{tpu_custom_call.1} parent=1 // pred_fallthru
      _
    // Predicated region
    $region10: #{tpu_custom_call.1} parent=1 // pred_check
      _
    $region11: #{tpu_custom_call.1} parent=1 // pred_check_branch
      %38 = sbr.rel (0) target = $region13
    $region12: #{tpu_custom_call.1} parent=1 // pred_region
      _
    $region13: #{tpu_custom_call.1} parent=1 // pred_fallthru
      _
    // Predicated region
    $region14: #{tpu_custom_call.1} parent=1 // pred_check
      _
    $region15: #{tpu_custom_call.1} parent=1 // pred_check_branch
      %40 = sbr.rel (0) target = $region17
    $region16: #{tpu_custom_call.1} parent=1 // pred_region
      %42 = vsyncadd [#allocation6], 0
      %s43 = sshll.u32 %s3, 4
      %s44 = int_to_ptr.hbm [resolvable:$true] %s43
      %s45 = sshll.u32 [#allocation7], 4
      %s46 = int_to_ptr.vmem [resolvable:$true] %s45
      %51 = dma.hbm_to_vmem [thread:$0]  %s44, 1024, %s46, [#allocation6], 64, 64, 4
    $region17: #{tpu_custom_call.1} parent=1 // pred_fallthru
      _
    // Predicated region
    $region18: #{tpu_custom_call.1} parent=1 // pred_check
      _
    $region19: #{tpu_custom_call.1} parent=1 // pred_check_branch
      %53 = sbr.rel (0) target = $region21
    $region20: #{tpu_custom_call.1} parent=1 // pred_region
      _
    $region21: #{tpu_custom_call.1} parent=1 // pred_fallthru
      _
    // Predicated region
    $region22: #{tpu_custom_call.1} parent=1 // pred_check
      _
    $region23: #{tpu_custom_call.1} parent=1 // pred_check_branch
      %55 = sbr.rel (0) target = $region25
    $region24: #{tpu_custom_call.1} parent=1 // pred_region
      %57 = dma.done [#allocation3], 64
    $region25: #{tpu_custom_call.1} parent=1 // pred_fallthru
      _
    // Predicated region
    $region26: #{tpu_custom_call.1} parent=1 // pred_check
      _
    $region27: #{tpu_custom_call.1} parent=1 // pred_check_branch
      %59 = sbr.rel (0) target = $region29
    $region28: #{tpu_custom_call.1} parent=1 // pred_region
      %61 = dma.done [#allocation6], 256
    $region29: #{tpu_custom_call.1} parent=1 // pred_fallthru
      _
    // Predicated region
    $region30: #{tpu_custom_call.1} parent=1 // pred_check
      _
    $region31: #{tpu_custom_call.1} parent=1 // pred_check_branch
      %63 = sbr.rel (0) target = $region33
    $region32: #{tpu_custom_call.1} parent=1 // pred_region
      %65 = dma.done [#allocation6], 1024
    $region33: #{tpu_custom_call.1} parent=1 // pred_fallthru
      _
    %v67 = vld [vmem:[#allocation2] sm:$0xf]
    %v68 = vld [vmem:[#allocation5] sm:$0xf]
    %v69 = vld [vmem:[#allocation5 + $0x4] sm:$0xf]
    %v70 = vld [vmem:[#allocation5 + $0x8] sm:$0xf]
    %v71 = vld [vmem:[#allocation5 + $0xc] sm:$0xf]
    %v72 = vld [vmem:[%s2] sm:$0x1]
    %v74 = vperm.slane %v72, 0
    %v80 = vunpack.c.l.b16 %v68
    %v81 = vunpack.c.l.b16 %v69
    %v82 = vunpack.c.l.b16 %v70
    %v83 = vunpack.c.l.b16 %v71
    %v84 = vpack.c.b16 %v81, %v80
    %v85 = vpack.c.b16 %v83, %v82
    %vm88 = vcmask 261120
    %v90 = vsel %vm88, %v67, 0
    %92 = vmatpush.bf16.msra.mxu0 0
    %93 = vmatpush.bf16.msra.mxu0 0
    %94 = vmatpush.bf16.msra.mxu0 0
    %95 = vmatpush.bf16.msra.mxu0 0
    %96 = vmatpush.bf16.msra.mxu0 0
    %97 = vmatpush.bf16.msra.mxu0 0
    %98 = vmatpush.bf16.msra.mxu0 %v85
    %99 = vmatpush.bf16.msra.mxu0 %v84
    %100 = vmatmul.bf16.gmra.mxu0 %v90
    %v101 = vpop.f32.mrf.mxu0
    %v102 = vadd.f32 %v74, %v101
    %v103 = vpop.f32.mrf.mxu0
    %104 = vdwg.mxu0
    %v105 = vxor.u32 %v102, 2147483648
    %v106 = vmul.f32 %v105, 1.442695
    %v107 = vpow.pop %v106
    %v108 = vadd.f32 %v107, 1.0
    %v109 = vrcp.pop %v108
    %v110 = vmul.f32 %v108, %v109
    %v111 = vsub.f32 1.0, %v110
    %v112 = vmul.f32 %v109, %v111
    %v113 = vadd.f32 %v109, %v112
    %vm114 = vweird.f32 %v108
    %vm115 = vweird.f32 %v109
    %vm116 = vmor %vm114, %vm115
    %v117 = vsel %vm116, %v109, %v113
    %v118 = vand.u32 2147483647, %v108
    %vm119 = vcmp.eq.f32.partialorder %v118, 8.507059e+37
    %v120 = vand.u32 %v108, 2147483648
    %v121 = vor.u32 1.1754944e-38, %v120
    %v122 = vsel %vm119, %v121, %v117
    %v123 = vmul.f32 1.0, %v122
    %v124 = vmul.f32 %v102, %v123
    %v125 = vpack.c.bf16 %v124, %v124
    %v126 = vld [vmem:[#allocation7] sm:$0xf]
    %v127 = vld [vmem:[#allocation7 + $0x4] sm:$0xf]
    %v128 = vld [vmem:[#allocation7 + $0x8] sm:$0xf]
    %v129 = vld [vmem:[#allocation7 + $0xc] sm:$0xf]
    %v130 = vld [vmem:[#allocation7 + $0x10] sm:$0xf]
    %v131 = vld [vmem:[#allocation7 + $0x14] sm:$0xf]
    %v132 = vld [vmem:[#allocation7 + $0x18] sm:$0xf]
    %v133 = vld [vmem:[#allocation7 + $0x1c] sm:$0xf]
    %v134 = vld [vmem:[#allocation7 + $0x20] sm:$0xf]
    %v135 = vld [vmem:[#allocation7 + $0x24] sm:$0xf]
    %v136 = vld [vmem:[#allocation7 + $0x28] sm:$0xf]
    %v137 = vld [vmem:[#allocation7 + $0x2c] sm:$0xf]
    %v138 = vld [vmem:[#allocation7 + $0x30] sm:$0xf]
    %v139 = vld [vmem:[#allocation7 + $0x34] sm:$0xf]
    %v140 = vld [vmem:[#allocation7 + $0x38] sm:$0xf]
    %v141 = vld [vmem:[#allocation7 + $0x3c] sm:$0xf]
    %v142 = vld [vmem:[%s4] sm:$0x1]
    %v144 = vperm.slane %v142, 0
    %v162 = vunpack.c.l.b16 %v126
    %v163 = vunpack.c.l.b16 %v127
    %v164 = vunpack.c.l.b16 %v128
    %v165 = vunpack.c.l.b16 %v129
    %v166 = vunpack.c.l.b16 %v130
    %v167 = vunpack.c.l.b16 %v131
    %v168 = vunpack.c.l.b16 %v132
    %v169 = vunpack.c.l.b16 %v133
    %v170 = vunpack.c.l.b16 %v134
    %v171 = vunpack.c.l.b16 %v135
    %v172 = vunpack.c.l.b16 %v136
    %v173 = vunpack.c.l.b16 %v137
    %v174 = vunpack.c.l.b16 %v138
    %v175 = vunpack.c.l.b16 %v139
    %v176 = vunpack.c.l.b16 %v140
    %v177 = vunpack.c.l.b16 %v141
    %v178 = vpack.c.b16 %v163, %v162
    %v179 = vpack.c.b16 %v165, %v164
    %v180 = vpack.c.b16 %v167, %v166
    %v181 = vpack.c.b16 %v169, %v168
    %v182 = vpack.c.b16 %v171, %v170
    %v183 = vpack.c.b16 %v173, %v172
    %v184 = vpack.c.b16 %v175, %v174
    %v185 = vpack.c.b16 %v177, %v176
    %194 = vmatpush.bf16.msra.mxu0 %v185
    %195 = vmatpush.bf16.msra.mxu0 %v184
    %196 = vmatpush.bf16.msra.mxu0 %v183
    %197 = vmatpush.bf16.msra.mxu0 %v182
    %198 = vmatpush.bf16.msra.mxu0 %v181
    %199 = vmatpush.bf16.msra.mxu0 %v180
    %200 = vmatpush.bf16.msra.mxu0 %v179
    %201 = vmatpush.bf16.msra.mxu0 %v178
    %202 = vmatmul.bf16.gmra.mxu0 %v125
    %v203 = vpop.f32.mrf.mxu0
    %v204 = vadd.f32 %v144, %v203
    %v205 = vpop.f32.mrf.mxu0
    %206 = vdwg.mxu0
    %207 = vst [vmem:[#allocation8] sm:$0xff] %v204
    // Predicated region
    $region34: #{tpu_custom_call.1} parent=1 // pred_check
      _
    $region35: #{tpu_custom_call.1} parent=1 // pred_check_branch
      %209 = sbr.rel (0) target = $region37
    $region36: #{tpu_custom_call.1} parent=1 // pred_region
      %211 = vsyncadd [#allocation4], 0
      %s213 = sshll.u32 [#allocation8], 4
      %s214 = int_to_ptr.vmem [resolvable:$true] %s213
      %s215 = sshll.u32 %s5, 4
      %s216 = int_to_ptr.hbm [resolvable:$true] %s215
      %218 = dma.vmem_to_hbm [thread:$0]  %s214, 128, %s216, [#allocation4]
    $region37: #{tpu_custom_call.1} parent=1 // pred_fallthru
      _
    // Predicated region
    $region38: #{tpu_custom_call.1} parent=1 // pred_check
      _
    $region39: #{tpu_custom_call.1} parent=1 // pred_check_branch
      %220 = sbr.rel (0) target = $region41
    $region40: #{tpu_custom_call.1} parent=1 // pred_region
      %222 = dma.done [#allocation4], 128
    $region41: #{tpu_custom_call.1} parent=1 // pred_fallthru
      _
    %223 = vsyncpa [#allocation3], 1
    %224 = vsyncpa [#allocation6], 1
    %225 = vsyncpa [#allocation4], 1

</llo_original>
